<compile_context>
chip_gen: v6e
topology: v6e:2x2x1
jax: 0.10.0
libtpu: 0.0.40
codegen_flags: <defaults>
</compile_context>

<pallas_src>
import jax
import jax.numpy as jnp
from jax.experimental import pallas as pl
from jax.experimental.pallas import tpu as pltpu


# --------------------------------------------------------------------------
# Kernel
# --------------------------------------------------------------------------
def bottleneck1d_kernel(x_ref, halo_ref, w1_ref, b1_ref, w2_ref, b2_ref,
                        w3_ref, b3_ref, o_ref):
    i = pl.program_id(1)
    n_tiles = pl.num_programs(1)
    TL = x_ref.shape[0]

    x = x_ref[...]                                           # (TL, C)  f32
    w1 = w1_ref[...]                                         # (C, P)   bf16

    # ---- conv1 (1x1, BN scale folded) + bias + relu ----------------------
    h = jnp.dot(x.astype(jnp.bfloat16), w1, preferred_element_type=jnp.float32)
    h = jnp.maximum(h + b1_ref[...], 0.0)                    # (TL, P) f32

    # ---- halo rows: h just outside this tile (zero at sequence edges) ----
    hh = jnp.dot(halo_ref[...].astype(jnp.bfloat16), w1,
                 preferred_element_type=jnp.float32)
    hh = jnp.maximum(hh + b1_ref[...], 0.0)                  # (2, P)
    h_left = jnp.where(i == 0, 0.0, hh[0:1, :])              # (1, P)
    h_right = jnp.where(i == n_tiles - 1, 0.0, hh[1:2, :])   # (1, P)

    # ---- conv2 (k=3, stride=1, pad=1) + bias + relu -----------------------
    # shifted neighbours via XLU rolls; the wrapped row is fixed with the halo
    row = jax.lax.broadcasted_iota(jnp.int32, h.shape, 0)
    h_prev = jnp.where(row == 0, h_left, pltpu.roll(h, shift=1, axis=0))
    h_next = jnp.where(row == TL - 1, h_right,
                       pltpu.roll(h, shift=TL - 1, axis=0))
    h2 = (jnp.dot(h_prev.astype(jnp.bfloat16), w2_ref[0],
                  preferred_element_type=jnp.float32)
          + jnp.dot(h.astype(jnp.bfloat16), w2_ref[1],
                    preferred_element_type=jnp.float32)
          + jnp.dot(h_next.astype(jnp.bfloat16), w2_ref[2],
                    preferred_element_type=jnp.float32))
    h2 = jnp.maximum(h2 + b2_ref[...], 0.0)                  # (TL, P)

    # ---- conv3 (1x1) + bias + residual + relu -----------------------------
    h3 = jnp.dot(h2.astype(jnp.bfloat16), w3_ref[...],
                 preferred_element_type=jnp.float32)
    o_ref[...] = jnp.maximum(h3 + b3_ref[...] + x, 0.0)


# --------------------------------------------------------------------------
# Wrappers
# --------------------------------------------------------------------------
def fold_params(params):
    """Fold eval-mode BN scales into conv weights; bf16 matmul operands."""
    w1, s1, b1, w2, s2, b2, w3, s3, b3 = params
    w1f = (w1 * s1).astype(jnp.bfloat16)                     # (Cin, P)
    w2f = (w2 * s2.reshape(1, 1, -1)).astype(jnp.bfloat16)   # (3, P, P)
    w3f = (w3 * s3).astype(jnp.bfloat16)                     # (P, Cout)
    return (w1f, b1.astype(jnp.float32), w2f, b2.astype(jnp.float32),
            w3f, b3.astype(jnp.float32))


def _pick_tile(L, target=512):
    """Largest L-tile <= target that divides L and is a multiple of 8 (else full L)."""
    if L <= target:
        return L
    for tl in range(target, 7, -8):
        if L % tl == 0:
            return tl
    # TODO(synk): ragged L (no aligned divisor) falls back to a full-L slab;
    #             add a masked remainder tile if such L shows up in practice.
    return L


def bottleneck1d_nlc(x, params, *, tl=None):
    """Channels-last forward. x: (N, L, C) f32. Returns (N, L, C)."""
    w1f, b1, w2f, b2, w3f, b3 = fold_params(params)
    N, L, C = x.shape
    Cout = w3f.shape[1]
    assert Cout == C, "no downsample: inplanes must equal planes * expansion"

    TL = _pick_tile(L) if tl is None else tl
    assert L % TL == 0 and (TL == L or TL % 8 == 0)
    nL = L // TL

    # One x row on each side of every tile (zeros beyond the sequence ends).
    xp = jnp.pad(x, ((0, 0), (1, 1), (0, 0)))                # (N, L+2, C)
    left = xp[:, 0:(nL - 1) * TL + 1:TL, :]                  # (N, nL, C)
    right = xp[:, TL + 1:nL * TL + 2:TL, :]                  # (N, nL, C)
    halo = jnp.stack([left, right], axis=2)                  # (N, nL, 2, C)

    def const_spec(a):
        nd = a.ndim
        return pl.BlockSpec(a.shape, lambda n, i, _nd=nd: (0,) * _nd)

    out = pl.pallas_call(
        bottleneck1d_kernel,
        out_shape=jax.ShapeDtypeStruct((N, L, Cout), x.dtype),
        grid=(N, nL),
        in_specs=[
            pl.BlockSpec((None, TL, C), lambda n, i: (n, i, 0)),       # x tile
            pl.BlockSpec((None, None, 2, C), lambda n, i: (n, i, 0, 0)),  # halo
            const_spec(w1f), const_spec(b1),
            const_spec(w2f), const_spec(b2),
            const_spec(w3f), const_spec(b3),
        ],
        out_specs=pl.BlockSpec((None, TL, Cout), lambda n, i: (n, i, 0)),
        compiler_params=pltpu.CompilerParams(
            dimension_semantics=("parallel", "parallel"),
            vmem_limit_bytes=48 * 1024 * 1024),   # stays inside v7x 64 MiB
    )(x, halo, w1f, b1, w2f, b2, w3f, b3)
    return out


def bottleneck1d(x_ncl, params, *, tl=None):
    """PyTorch-layout wrapper: x (N, C, L) -> (N, C, L)."""
    # TODO(synk): keep the surrounding network channels-last so these two
    #             transposes are paid once per network, not once per block.
    x = jnp.transpose(x_ncl, (0, 2, 1))
    out = bottleneck1d_nlc(x, params, tl=tl)
    return jnp.transpose(out, (0, 2, 1))


# --------------------------------------------------------------------------
# Pure-JAX reference (same folded-BN / bf16-operand recipe)
# --------------------------------------------------------------------------
def ref_forward(x_ncl, params):
    w1f, b1, w2f, b2, w3f, b3 = fold_params(params)
    x = jnp.transpose(x_ncl, (0, 2, 1)).astype(jnp.float32)  # (N, L, C)
    L = x.shape[1]
    h = jnp.einsum('nlc,cp->nlp', x.astype(jnp.bfloat16), w1f,
                   preferred_element_type=jnp.float32)
    h = jnp.maximum(h + b1, 0.0)
    hb = h.astype(jnp.bfloat16)
    hp = jnp.pad(hb, ((0, 0), (1, 1), (0, 0)))
    h2 = sum(jnp.einsum('nlp,pq->nlq', hp[:, k:k + L], w2f[k],
                        preferred_element_type=jnp.float32) for k in range(3))
    h2 = jnp.maximum(h2 + b2, 0.0)
    h3 = jnp.einsum('nlq,qc->nlc', h2.astype(jnp.bfloat16), w3f,
                    preferred_element_type=jnp.float32)
    out = jnp.maximum(h3 + b3 + x, 0.0)
    return jnp.transpose(out, (0, 2, 1))


# --------------------------------------------------------------------------
# Deterministic synthetic parameters (conv weights + folded BN stats)
# --------------------------------------------------------------------------
def make_params(key, inplanes, planes, kernel_size=3, eps=1e-5):
    expansion = 4
    keys = jax.random.split(key, 6)

    def bn_fold(k, dim):
        kg, kb, km, kv = jax.random.split(k, 4)
        gamma = 1.0 + 0.1 * jax.random.normal(kg, (dim,), jnp.float32)
        beta = 0.1 * jax.random.normal(kb, (dim,), jnp.float32)
        mean = 0.1 * jax.random.normal(km, (dim,), jnp.float32)
        var = jnp.abs(1.0 + 0.1 * jax.random.normal(kv, (dim,), jnp.float32))
        scale = gamma / jnp.sqrt(var + eps)
        bias = beta - mean * scale
        return scale.reshape(1, dim), bias.reshape(1, dim)

    # conv1: torch (planes, inplanes, 1) -> layout (inplanes, planes)
    w1 = 0.1 * jax.random.normal(keys[0], (inplanes, planes), jnp.float32)
    s1, b1 = bn_fold(keys[1], planes)
    # conv2: torch (planes, planes, K) -> layout (K, cin, cout)
    w2 = 0.1 * jax.random.normal(keys[2], (kernel_size, planes, planes),
                                 jnp.float32)
    s2, b2 = bn_fold(keys[3], planes)
    # conv3: torch (planes*4, planes, 1) -> layout (planes, planes*4)
    w3 = 0.1 * jax.random.normal(keys[4], (planes, planes * expansion),
                                 jnp.float32)
    s3, b3 = bn_fold(keys[5], planes * expansion)
    return (w1, s1, b1, w2, s2, b2, w3, s3, b3)


if __name__ == "__main__":
    # Small but lane-friendly shapes: inplanes = planes * expansion = 128
    # (lane-aligned residual / conv3 output), L = 256 tiled as 4 x 64 rows.
    N, planes, L = 2, 32, 256
    inplanes = planes * 4                     # residual add requires this

    key = jax.random.PRNGKey(0)
    kx, kp = jax.random.split(key)
    x = jax.random.normal(kx, (N, inplanes, L), jnp.float32)   # NCL like torch
    params = make_params(kp, inplanes, planes)

    ref = ref_forward(x, params)

    # multi-tile path (exercises the k=3 halo across L-tile boundaries)
    out = jax.block_until_ready(bottleneck1d(x, params, tl=64))
    assert out.shape == (N, inplanes, L)
    assert jnp.allclose(out, ref, atol=2e-3, rtol=2e-3), "mismatch (tiled)"

    # default-tile path (single tile for this L)
    out1 = jax.block_until_ready(bottleneck1d(x, params))
    assert jnp.allclose(out1, ref, atol=2e-3, rtol=2e-3), "mismatch (full slab)"

    print("KERNEL_OK")
</pallas_src>

<mosaic_0001>
module attributes {stable_mosaic.version = 11 : i64} {
  func.func @bottleneck1d_kernel(%arg0: i32, %arg1: i32, %arg2: memref<1x64x128xf32, #tpu.memory_space<vmem>>, %arg3: memref<1x1x2x128xf32, #tpu.memory_space<vmem>>, %arg4: memref<128x32xbf16, #tpu.memory_space<vmem>>, %arg5: memref<1x32xf32, #tpu.memory_space<vmem>>, %arg6: memref<3x32x32xbf16, #tpu.memory_space<vmem>>, %arg7: memref<1x32xf32, #tpu.memory_space<vmem>>, %arg8: memref<32x128xbf16, #tpu.memory_space<vmem>>, %arg9: memref<1x128xf32, #tpu.memory_space<vmem>>, %arg10: memref<1x64x128xf32, #tpu.memory_space<vmem>>) attributes {dimension_semantics = [#tpu.dimension_semantics<parallel>, #tpu.dimension_semantics<parallel>], iteration_bounds = array<i64: 2, 4>, scalar_prefetch = 0 : i64, scratch_operands = 0 : i64, tpu.core_type = #tpu.core_type<tc>, window_params = [{transform_indices = @transform_0, window_bounds = array<i64: 1, 64, 128>}, {transform_indices = @transform_1, window_bounds = array<i64: 1, 1, 2, 128>}, {pipeline_mode = #tpu.pipeline_mode<synchronous>, transform_indices = @transform_2, window_bounds = array<i64: 128, 32>}, {pipeline_mode = #tpu.pipeline_mode<synchronous>, transform_indices = @transform_3, window_bounds = array<i64: 1, 32>}, {pipeline_mode = #tpu.pipeline_mode<synchronous>, transform_indices = @transform_4, window_bounds = array<i64: 3, 32, 32>}, {pipeline_mode = #tpu.pipeline_mode<synchronous>, transform_indices = @transform_5, window_bounds = array<i64: 1, 32>}, {pipeline_mode = #tpu.pipeline_mode<synchronous>, transform_indices = @transform_6, window_bounds = array<i64: 32, 128>}, {pipeline_mode = #tpu.pipeline_mode<synchronous>, transform_indices = @transform_7, window_bounds = array<i64: 1, 128>}, {transform_indices = @transform_8, window_bounds = array<i64: 1, 64, 128>}]} {
    %c0 = arith.constant 0 : index
    %c0_0 = arith.constant 0 : index
    %c0_1 = arith.constant 0 : index
    %0 = vector.load %arg2[%c0, %c0_0, %c0_1] : memref<1x64x128xf32, #tpu.memory_space<vmem>>, vector<1x64x128xf32>
    %1 = vector.shape_cast %0 : vector<1x64x128xf32> to vector<64x128xf32>
    %c0_2 = arith.constant 0 : index
    %c0_3 = arith.constant 0 : index
    %2 = vector.load %arg4[%c0_2, %c0_3] : memref<128x32xbf16, #tpu.memory_space<vmem>>, vector<128x32xbf16>
    %3 = arith.truncf %1 : vector<64x128xf32> to vector<64x128xbf16>
    %cst = arith.constant dense<0.000000e+00> : vector<64x32xf32>
    %4 = tpu.matmul %3, %2, %cst {dimension_numbers = #tpu.dot_dimension_numbers<[1], [0], [0], [1], [0, 0, 1, 1], [], []>} : vector<64x128xbf16>, vector<128x32xbf16>, vector<64x32xf32> -> vector<64x32xf32>
    %c0_4 = arith.constant 0 : index
    %c0_5 = arith.constant 0 : index
    %5 = vector.load %arg5[%c0_4, %c0_5] : memref<1x32xf32, #tpu.memory_space<vmem>>, vector<1x32xf32>
    %6 = vector.broadcast %5 : vector<1x32xf32> to vector<64x32xf32>
    %7 = arith.addf %4, %6 : vector<64x32xf32>
    %cst_6 = arith.constant 0.000000e+00 : f32
    %8 = vector.broadcast %cst_6 : f32 to vector<64x32xf32>
    %9 = arith.maximumf %7, %8 : vector<64x32xf32>
    %c0_7 = arith.constant 0 : index
    %c0_8 = arith.constant 0 : index
    %c0_9 = arith.constant 0 : index
    %c0_10 = arith.constant 0 : index
    %10 = vector.load %arg3[%c0_7, %c0_8, %c0_9, %c0_10] : memref<1x1x2x128xf32, #tpu.memory_space<vmem>>, vector<1x1x2x128xf32>
    %11 = vector.shape_cast %10 : vector<1x1x2x128xf32> to vector<2x128xf32>
    %12 = arith.truncf %11 : vector<2x128xf32> to vector<2x128xbf16>
    %cst_11 = arith.constant dense<0.000000e+00> : vector<2x32xf32>
    %13 = tpu.matmul %12, %2, %cst_11 {dimension_numbers = #tpu.dot_dimension_numbers<[1], [0], [0], [1], [0, 0, 1, 1], [], []>} : vector<2x128xbf16>, vector<128x32xbf16>, vector<2x32xf32> -> vector<2x32xf32>
    %c0_12 = arith.constant 0 : index
    %c0_13 = arith.constant 0 : index
    %14 = vector.load %arg5[%c0_12, %c0_13] : memref<1x32xf32, #tpu.memory_space<vmem>>, vector<1x32xf32>
    %15 = vector.broadcast %14 : vector<1x32xf32> to vector<2x32xf32>
    %16 = arith.addf %13, %15 : vector<2x32xf32>
    %cst_14 = arith.constant 0.000000e+00 : f32
    %17 = vector.broadcast %cst_14 : f32 to vector<2x32xf32>
    %18 = arith.maximumf %16, %17 : vector<2x32xf32>
    %c0_i32 = arith.constant 0 : i32
    %19 = arith.cmpi eq, %arg1, %c0_i32 : i32
    %20 = vector.extract_strided_slice %18 {offsets = [0, 0], sizes = [1, 32], strides = [1, 1]} : vector<2x32xf32> to vector<1x32xf32>
    %cst_15 = arith.constant 0.000000e+00 : f32
    %21 = vector.broadcast %cst_15 : f32 to vector<1x32xf32>
    %22 = arith.select %19, %21, %20 : vector<1x32xf32>
    %c3_i32 = arith.constant 3 : i32
    %23 = arith.cmpi eq, %arg1, %c3_i32 : i32
    %24 = vector.extract_strided_slice %18 {offsets = [1, 0], sizes = [1, 32], strides = [1, 1]} : vector<2x32xf32> to vector<1x32xf32>
    %cst_16 = arith.constant 0.000000e+00 : f32
    %25 = vector.broadcast %cst_16 : f32 to vector<1x32xf32>
    %26 = arith.select %23, %25, %24 : vector<1x32xf32>
    %27 = tpu.iota {dimensions = array<i32: 0>} : vector<64x32xi32>
    %c0_i32_17 = arith.constant 0 : i32
    %28 = vector.broadcast %c0_i32_17 : i32 to vector<64x32xi32>
    %29 = arith.cmpi eq, %27, %28 : vector<64x32xi32>
    %c1_i32 = arith.constant 1 : i32
    %30 = tpu.dynamic_rotate %9 by %c1_i32 dim 0 : vector<64x32xf32>, i32 -> vector<64x32xf32>
    %31 = vector.shape_cast %22 : vector<1x32xf32> to vector<1x32xf32>
    %32 = vector.broadcast %31 : vector<1x32xf32> to vector<64x32xf32>
    %33 = arith.select %29, %32, %30 : vector<64x32xi1>, vector<64x32xf32>
    %c63_i32 = arith.constant 63 : i32
    %34 = vector.broadcast %c63_i32 : i32 to vector<64x32xi32>
    %35 = arith.cmpi eq, %27, %34 : vector<64x32xi32>
    %c63_i32_18 = arith.constant 63 : i32
    %36 = tpu.dynamic_rotate %9 by %c63_i32_18 dim 0 : vector<64x32xf32>, i32 -> vector<64x32xf32>
    %37 = vector.shape_cast %26 : vector<1x32xf32> to vector<1x32xf32>
    %38 = vector.broadcast %37 : vector<1x32xf32> to vector<64x32xf32>
    %39 = arith.select %35, %38, %36 : vector<64x32xi1>, vector<64x32xf32>
    %40 = arith.truncf %33 : vector<64x32xf32> to vector<64x32xbf16>
    %c0_19 = arith.constant 0 : index
    %c0_20 = arith.constant 0 : index
    %c0_21 = arith.constant 0 : index
    %41 = vector.load %arg6[%c0_19, %c0_20, %c0_21] : memref<3x32x32xbf16, #tpu.memory_space<vmem>>, vector<1x32x32xbf16>
    %42 = vector.shape_cast %41 : vector<1x32x32xbf16> to vector<32x32xbf16>
    %cst_22 = arith.constant dense<0.000000e+00> : vector<64x32xf32>
    %43 = tpu.matmul %40, %42, %cst_22 {dimension_numbers = #tpu.dot_dimension_numbers<[1], [0], [0], [1], [0, 0, 1, 1], [], []>} : vector<64x32xbf16>, vector<32x32xbf16>, vector<64x32xf32> -> vector<64x32xf32>
    %44 = arith.truncf %9 : vector<64x32xf32> to vector<64x32xbf16>
    %c1 = arith.constant 1 : index
    %c0_23 = arith.constant 0 : index
    %c0_24 = arith.constant 0 : index
    %45 = vector.load %arg6[%c1, %c0_23, %c0_24] : memref<3x32x32xbf16, #tpu.memory_space<vmem>>, vector<1x32x32xbf16>
    %46 = vector.shape_cast %45 : vector<1x32x32xbf16> to vector<32x32xbf16>
    %cst_25 = arith.constant dense<0.000000e+00> : vector<64x32xf32>
    %47 = tpu.matmul %44, %46, %cst_25 {dimension_numbers = #tpu.dot_dimension_numbers<[1], [0], [0], [1], [0, 0, 1, 1], [], []>} : vector<64x32xbf16>, vector<32x32xbf16>, vector<64x32xf32> -> vector<64x32xf32>
    %48 = arith.addf %43, %47 : vector<64x32xf32>
    %49 = arith.truncf %39 : vector<64x32xf32> to vector<64x32xbf16>
    %c2 = arith.constant 2 : index
    %c0_26 = arith.constant 0 : index
    %c0_27 = arith.constant 0 : index
    %50 = vector.load %arg6[%c2, %c0_26, %c0_27] : memref<3x32x32xbf16, #tpu.memory_space<vmem>>, vector<1x32x32xbf16>
    %51 = vector.shape_cast %50 : vector<1x32x32xbf16> to vector<32x32xbf16>
    %cst_28 = arith.constant dense<0.000000e+00> : vector<64x32xf32>
    %52 = tpu.matmul %49, %51, %cst_28 {dimension_numbers = #tpu.dot_dimension_numbers<[1], [0], [0], [1], [0, 0, 1, 1], [], []>} : vector<64x32xbf16>, vector<32x32xbf16>, vector<64x32xf32> -> vector<64x32xf32>
    %53 = arith.addf %48, %52 : vector<64x32xf32>
    %c0_29 = arith.constant 0 : index
    %c0_30 = arith.constant 0 : index
    %54 = vector.load %arg7[%c0_29, %c0_30] : memref<1x32xf32, #tpu.memory_space<vmem>>, vector<1x32xf32>
    %55 = vector.broadcast %54 : vector<1x32xf32> to vector<64x32xf32>
    %56 = arith.addf %53, %55 : vector<64x32xf32>
    %cst_31 = arith.constant 0.000000e+00 : f32
    %57 = vector.broadcast %cst_31 : f32 to vector<64x32xf32>
    %58 = arith.maximumf %56, %57 : vector<64x32xf32>
    %59 = arith.truncf %58 : vector<64x32xf32> to vector<64x32xbf16>
    %c0_32 = arith.constant 0 : index
    %c0_33 = arith.constant 0 : index
    %60 = vector.load %arg8[%c0_32, %c0_33] : memref<32x128xbf16, #tpu.memory_space<vmem>>, vector<32x128xbf16>
    %cst_34 = arith.constant dense<0.000000e+00> : vector<64x128xf32>
    %61 = tpu.matmul %59, %60, %cst_34 {dimension_numbers = #tpu.dot_dimension_numbers<[1], [0], [0], [1], [0, 0, 1, 1], [], []>} : vector<64x32xbf16>, vector<32x128xbf16>, vector<64x128xf32> -> vector<64x128xf32>
    %c0_35 = arith.constant 0 : index
    %c0_36 = arith.constant 0 : index
    %62 = vector.load %arg9[%c0_35, %c0_36] : memref<1x128xf32, #tpu.memory_space<vmem>>, vector<1x128xf32>
    %63 = vector.broadcast %62 : vector<1x128xf32> to vector<64x128xf32>
    %64 = arith.addf %61, %63 : vector<64x128xf32>
    %65 = arith.addf %64, %1 : vector<64x128xf32>
    %cst_37 = arith.constant 0.000000e+00 : f32
    %66 = vector.broadcast %cst_37 : f32 to vector<64x128xf32>
    %67 = arith.maximumf %65, %66 : vector<64x128xf32>
    %c0_38 = arith.constant 0 : index
    %c0_39 = arith.constant 0 : index
    %c0_40 = arith.constant 0 : index
    %68 = vector.load %arg10[%c0_38, %c0_39, %c0_40] : memref<1x64x128xf32, #tpu.memory_space<vmem>>, vector<1x64x128xf32>
    %69 = vector.shape_cast %68 : vector<1x64x128xf32> to vector<64x128xf32>
    %70 = vector.shape_cast %67 : vector<64x128xf32> to vector<1x64x128xf32>
    tpu.vector_store %arg10[%c0_38, %c0_39, %c0_40], %70 {strides = array<i32>} : memref<1x64x128xf32, #tpu.memory_space<vmem>>, vector<1x64x128xf32>,
    return
  }
  func.func @transform_0(%arg0: i32, %arg1: i32) -> (i32, i32, i32) {
    %c0_i32 = arith.constant 0 : i32
    %c0_i32_0 = arith.constant 0 : i32
    return %arg0, %arg1, %c0_i32 : i32, i32, i32
  }
  func.func @transform_1(%arg0: i32, %arg1: i32) -> (i32, i32, i32, i32) {
    %c0_i32 = arith.constant 0 : i32
    %c0_i32_0 = arith.constant 0 : i32
    %c0_i32_1 = arith.constant 0 : i32
    return %arg0, %arg1, %c0_i32, %c0_i32_0 : i32, i32, i32, i32
  }
  func.func @transform_2(%arg0: i32, %arg1: i32) -> (i32, i32) {
    %c0_i32 = arith.constant 0 : i32
    %c0_i32_0 = arith.constant 0 : i32
    %c0_i32_1 = arith.constant 0 : i32
    return %c0_i32, %c0_i32_0 : i32, i32
  }
  func.func @transform_3(%arg0: i32, %arg1: i32) -> (i32, i32) {
    %c0_i32 = arith.constant 0 : i32
    %c0_i32_0 = arith.constant 0 : i32
    %c0_i32_1 = arith.constant 0 : i32
    return %c0_i32, %c0_i32_0 : i32, i32
  }
  func.func @transform_4(%arg0: i32, %arg1: i32) -> (i32, i32, i32) {
    %c0_i32 = arith.constant 0 : i32
    %c0_i32_0 = arith.constant 0 : i32
    %c0_i32_1 = arith.constant 0 : i32
    %c0_i32_2 = arith.constant 0 : i32
    return %c0_i32, %c0_i32_0, %c0_i32_1 : i32, i32, i32
  }
  func.func @transform_5(%arg0: i32, %arg1: i32) -> (i32, i32) {
    %c0_i32 = arith.constant 0 : i32
    %c0_i32_0 = arith.constant 0 : i32
    %c0_i32_1 = arith.constant 0 : i32
    return %c0_i32, %c0_i32_0 : i32, i32
  }
  func.func @transform_6(%arg0: i32, %arg1: i32) -> (i32, i32) {
    %c0_i32 = arith.constant 0 : i32
    %c0_i32_0 = arith.constant 0 : i32
    %c0_i32_1 = arith.constant 0 : i32
    return %c0_i32, %c0_i32_0 : i32, i32
  }
  func.func @transform_7(%arg0: i32, %arg1: i32) -> (i32, i32) {
    %c0_i32 = arith.constant 0 : i32
    %c0_i32_0 = arith.constant 0 : i32
    %c0_i32_1 = arith.constant 0 : i32
    return %c0_i32, %c0_i32_0 : i32, i32
  }
  func.func @transform_8(%arg0: i32, %arg1: i32) -> (i32, i32, i32) {
    %c0_i32 = arith.constant 0 : i32
    %c0_i32_0 = arith.constant 0 : i32
    return %arg0, %arg1, %c0_i32 : i32, i32, i32
  }
}

</mosaic_0001>

<llo_original>
// kernel: tpu_custom_call.1
$region0: #{tpu_custom_call.1}
  #allocation0 [shape = 'u32[]', space=smem, size = 0x4, offset = 0x4, fixed_abs, tag = 'smem constant byte address 0x4 - core index']
  #allocation1 [shape = 'u32[144,128]{1,0:T(1,128)}', space=vmem, size = 0x12000, scoped, tag = 'internal scratch']
  %s0 = inlined_call_operand.hbm [shape: f32[2,256,128], index: 0, kind: input, shape index: {}]
  %s1 = inlined_call_operand.vmem [shape: f32[2,4,2,128], index: 1, kind: input, shape index: {}]
  %s2 = inlined_call_operand.vmem [shape: bf16[128,32], index: 2, kind: input, shape index: {}]
  %s3 = inlined_call_operand.vmem [shape: f32[1,32], index: 3, kind: input, shape index: {}]
  %s4 = inlined_call_operand.vmem [shape: bf16[3,32,32], index: 4, kind: input, shape index: {}]
  %s5 = inlined_call_operand.vmem [shape: f32[1,32], index: 5, kind: input, shape index: {}]
  %s6 = inlined_call_operand.vmem [shape: bf16[32,128], index: 6, kind: input, shape index: {}]
  %s7 = inlined_call_operand.vmem [shape: f32[1,128], index: 7, kind: input, shape index: {}]
  %s8 = inlined_call_operand.hbm [shape: f32[2,256,128], index: 8, kind: output, shape index: {}]
  %s9 = sld [smem:[#allocation0]]
  $region69: #{tpu_custom_call.1} parent=0
    _
  %s11 = ssub.s32 1, %s9
  %s12 = scalar_select 0, %s11, %s9
  $region1: #{tpu_custom_call.1} parent=0
    #allocation2 [shape = 'u8[65536]{0}', space=vmem, size = 0x10000, scoped, tag = 'input window, operand 0']
    #allocation3 [shape = 's32[2]{0}', space=sflag, size = 0x8, scoped, tag = 'scoped memory for tpu_custom_call.1']
    #allocation4 [shape = 's32[2]{0}', space=sflag, size = 0x8, scoped, tag = 'scoped memory for tpu_custom_call.1']
    #allocation5 [shape = 'u8[65536]{0}', space=vmem, size = 0x10000, scoped, tag = 'output window, operand 0']
    %13 = vsyncpa [#allocation3], 0
    %s14 = scalar_lea.sflag [#allocation3], 1
    %15 = vsyncpa %s14, 0
    %16 = vsyncpa [#allocation4], 0
    %s17 = scalar_lea.sflag [#allocation4], 1
    %18 = vsyncpa %s17, 0
    loop: start=0, step=1, limit=10
    $region2: #{tpu_custom_call.1} parent=1 // loop_pre_header
      _
    $region3: #{tpu_custom_call.1} parent=1 // loop_header
      %s20 = sphi 0, %s24
      %p21 = scmp.ge.s32.totalorder %s20, 10
      %s27 = sphi 0, %s39
      %s28 = sphi 0, %s35
      %s29 = sphi 0, %s27
      %s30 = sphi 0, %s28
      %s31 = sphi 0, %s29
      %s32 = sphi 0, %s30
      %s44 = sphi 0, %s46
      %s47 = sphi 0, %s44
      %s48 = sphi 0, %s47
      %s64 = sphi 0, %s48
      %s72 = sphi 0, %s74
      %s75 = sphi 0, %s72
      %s76 = sphi 0, %s75
      %s92 = sphi 0, %s76
      %s96 = sphi 0, %s96
      %s98 = sphi 0, %s96
      %s99 = sphi 0, %s98
      %s113 = sphi 0, %s99
      %s117 = sphi 0, %s117
      %s119 = sphi 0, %s117
      %s120 = sphi 0, %s119
      %s134 = sphi 0, %s120
      %s138 = sphi 0, %s138
      %s140 = sphi 0, %s138
      %s141 = sphi 0, %s140
      %s155 = sphi 0, %s141
      %s159 = sphi 0, %s159
      %s161 = sphi 0, %s159
      %s162 = sphi 0, %s161
      %s176 = sphi 0, %s162
      %s180 = sphi 0, %s180
      %s182 = sphi 0, %s180
      %s183 = sphi 0, %s182
      %s197 = sphi 0, %s183
      %s201 = sphi 0, %s201
      %s203 = sphi 0, %s201
      %s204 = sphi 0, %s203
      %s218 = sphi 0, %s204
      %s226 = sphi 0, %s228
      %s229 = sphi 0, %s226
      %s230 = sphi 0, %s229
      %s246 = sphi 0, %s230
    $region4: #{tpu_custom_call.1} parent=1 // loop_header_branch
      %23 = sbr.rel (%p21) target = $region8
    $region5: #{tpu_custom_call.1} parent=1 // loop_body
      %s25 = ssub.s32 %s20, 1
      %s26 = ssub.s32 %s20, 2
      %s33 = sadd.s32 1, %s28
      %p34 = scmp.ge.s32.totalorder %s33, 4
      %s35 = scalar_select %p34, 0, %s33
      %s36 = sadd.s32 1, %s27
      %s37 = scalar_select %p34, %s36, %s27
      %p38 = scmp.ge.s32.totalorder %s37, 2
      %s39 = scalar_select %p38, 0, %s37
      %s40 = ssub.s32 %s27, %s39
      %s41 = ssub.s32 %s28, %s35
      %s42 = sor.u32 %s40, %s41
      %p43 = scmp.eq.s32.totalorder %s42, 0
      %s45 = sadd.s32 %s44, 1
      %s46 = scalar_select %p43, %s44, %s45
      %p49 = pneg %p43
      %p50 = scmp.eq.s32.totalorder %s20, 7
      %p51 = por %p49, %p50
      %p52 = scmp.ne.s32.totalorder %s44, %s47
      %p53 = scmp.eq.s32.totalorder %s20, 0
      %p54 = por %p52, %p53
      %p55 = scmp.ne.s32.totalorder %s44, %s47
      %p56 = scmp.eq.s32.totalorder %s25, 7
      %p57 = por %p55, %p56
      %p58 = scmp.ne.s32.totalorder %s47, %s48
      %p59 = scmp.eq.s32.totalorder %s25, 0
      %p60 = por %p58, %p59
      %p61 = scmp.ne.s32.totalorder %s47, %s48
      %p62 = scmp.eq.s32.totalorder %s26, 7
      %p63 = por %p61, %p62
      %p65 = scmp.ne.s32.totalorder %s48, %s64
      %p66 = scmp.eq.s32.totalorder %s26, 0
      %p67 = por %p65, %p66
      %s68 = ssub.s32 %s27, %s39
      %s69 = ssub.s32 %s28, %s35
      %s70 = sor.u32 %s68, %s69
      %p71 = scmp.eq.s32.totalorder %s70, 0
      %s73 = sadd.s32 %s72, 1
      %s74 = scalar_select %p71, %s72, %s73
      %p77 = pneg %p71
      %p78 = scmp.eq.s32.totalorder %s20, 7
      %p79 = por %p77, %p78
      %p80 = scmp.ne.s32.totalorder %s72, %s75
      %p81 = scmp.eq.s32.totalorder %s20, 0
      %p82 = por %p80, %p81
      %p83 = scmp.ne.s32.totalorder %s72, %s75
      %p84 = scmp.eq.s32.totalorder %s25, 7
      %p85 = por %p83, %p84
      %p86 = scmp.ne.s32.totalorder %s75, %s76
      %p87 = scmp.eq.s32.totalorder %s25, 0
      %p88 = por %p86, %p87
      %p89 = scmp.ne.s32.totalorder %s75, %s76
      %p90 = scmp.eq.s32.totalorder %s26, 7
      %p91 = por %p89, %p90
      %p93 = scmp.ne.s32.totalorder %s76, %s92
      %p94 = scmp.eq.s32.totalorder %s26, 0
      %p95 = por %p93, %p94
      %s97 = sadd.s32 %s96, 1
      %p100 = scmp.eq.s32.totalorder %s20, 7
      %p101 = scmp.ne.s32.totalorder %s96, %s98
      %p102 = scmp.eq.s32.totalorder %s20, 0
      %p103 = por %p101, %p102
      %p104 = scmp.ne.s32.totalorder %s96, %s98
      %p105 = scmp.eq.s32.totalorder %s25, 7
      %p106 = por %p104, %p105
      %p107 = scmp.ne.s32.totalorder %s98, %s99
      %p108 = scmp.eq.s32.totalorder %s25, 0
      %p109 = por %p107, %p108
      %p110 = scmp.ne.s32.totalorder %s98, %s99
      %p111 = scmp.eq.s32.totalorder %s26, 7
      %p112 = por %p110, %p111
      %p114 = scmp.ne.s32.totalorder %s99, %s113
      %p115 = scmp.eq.s32.totalorder %s26, 0
      %p116 = por %p114, %p115
      %s118 = sadd.s32 %s117, 1
      %p121 = scmp.eq.s32.totalorder %s20, 7
      %p122 = scmp.ne.s32.totalorder %s117, %s119
      %p123 = scmp.eq.s32.totalorder %s20, 0
      %p124 = por %p122, %p123
      %p125 = scmp.ne.s32.totalorder %s117, %s119
      %p126 = scmp.eq.s32.totalorder %s25, 7
      %p127 = por %p125, %p126
      %p128 = scmp.ne.s32.totalorder %s119, %s120
      %p129 = scmp.eq.s32.totalorder %s25, 0
      %p130 = por %p128, %p129
      %p131 = scmp.ne.s32.totalorder %s119, %s120
      %p132 = scmp.eq.s32.totalorder %s26, 7
      %p133 = por %p131, %p132
      %p135 = scmp.ne.s32.totalorder %s120, %s134
      %p136 = scmp.eq.s32.totalorder %s26, 0
      %p137 = por %p135, %p136
      %s139 = sadd.s32 %s138, 1
      %p142 = scmp.eq.s32.totalorder %s20, 7
      %p143 = scmp.ne.s32.totalorder %s138, %s140
      %p144 = scmp.eq.s32.totalorder %s20, 0
      %p145 = por %p143, %p144
      %p146 = scmp.ne.s32.totalorder %s138, %s140
      %p147 = scmp.eq.s32.totalorder %s25, 7
      %p148 = por %p146, %p147
      %p149 = scmp.ne.s32.totalorder %s140, %s141
      %p150 = scmp.eq.s32.totalorder %s25, 0
      %p151 = por %p149, %p150
      %p152 = scmp.ne.s32.totalorder %s140, %s141
      %p153 = scmp.eq.s32.totalorder %s26, 7
      %p154 = por %p152, %p153
      %p156 = scmp.ne.s32.totalorder %s141, %s155
      %p157 = scmp.eq.s32.totalorder %s26, 0
      %p158 = por %p156, %p157
      %s160 = sadd.s32 %s159, 1
      %p163 = scmp.eq.s32.totalorder %s20, 7
      %p164 = scmp.ne.s32.totalorder %s159, %s161
      %p165 = scmp.eq.s32.totalorder %s20, 0
      %p166 = por %p164, %p165
      %p167 = scmp.ne.s32.totalorder %s159, %s161
      %p168 = scmp.eq.s32.totalorder %s25, 7
      %p169 = por %p167, %p168
      %p170 = scmp.ne.s32.totalorder %s161, %s162
      %p171 = scmp.eq.s32.totalorder %s25, 0
      %p172 = por %p170, %p171
      %p173 = scmp.ne.s32.totalorder %s161, %s162
      %p174 = scmp.eq.s32.totalorder %s26, 7
      %p175 = por %p173, %p174
      %p177 = scmp.ne.s32.totalorder %s162, %s176
      %p178 = scmp.eq.s32.totalorder %s26, 0
      %p179 = por %p177, %p178
      %s181 = sadd.s32 %s180, 1
      %p184 = scmp.eq.s32.totalorder %s20, 7
      %p185 = scmp.ne.s32.totalorder %s180, %s182
      %p186 = scmp.eq.s32.totalorder %s20, 0
      %p187 = por %p185, %p186
      %p188 = scmp.ne.s32.totalorder %s180, %s182
      %p189 = scmp.eq.s32.totalorder %s25, 7
      %p190 = por %p188, %p189
      %p191 = scmp.ne.s32.totalorder %s182, %s183
      %p192 = scmp.eq.s32.totalorder %s25, 0
      %p193 = por %p191, %p192
      %p194 = scmp.ne.s32.totalorder %s182, %s183
      %p195 = scmp.eq.s32.totalorder %s26, 7
      %p196 = por %p194, %p195
      %p198 = scmp.ne.s32.totalorder %s183, %s197
      %p199 = scmp.eq.s32.totalorder %s26, 0
      %p200 = por %p198, %p199
      %s202 = sadd.s32 %s201, 1
      %p205 = scmp.eq.s32.totalorder %s20, 7
      %p206 = scmp.ne.s32.totalorder %s201, %s203
      %p207 = scmp.eq.s32.totalorder %s20, 0
      %p208 = por %p206, %p207
      %p209 = scmp.ne.s32.totalorder %s201, %s203
      %p210 = scmp.eq.s32.totalorder %s25, 7
      %p211 = por %p209, %p210
      %p212 = scmp.ne.s32.totalorder %s203, %s204
      %p213 = scmp.eq.s32.totalorder %s25, 0
      %p214 = por %p212, %p213
      %p215 = scmp.ne.s32.totalorder %s203, %s204
      %p216 = scmp.eq.s32.totalorder %s26, 7
      %p217 = por %p215, %p216
      %p219 = scmp.ne.s32.totalorder %s204, %s218
      %p220 = scmp.eq.s32.totalorder %s26, 0
      %p221 = por %p219, %p220
      %s222 = ssub.s32 %s27, %s39
      %s223 = ssub.s32 %s28, %s35
      %s224 = sor.u32 %s222, %s223
      %p225 = scmp.eq.s32.totalorder %s224, 0
      %s227 = sadd.s32 %s226, 1
      %s228 = scalar_select %p225, %s226, %s227
      %p231 = pneg %p225
      %p232 = scmp.eq.s32.totalorder %s20, 7
      %p233 = por %p231, %p232
      %p234 = scmp.ne.s32.totalorder %s226, %s229
      %p235 = scmp.eq.s32.totalorder %s20, 0
      %p236 = por %p234, %p235
      %p237 = scmp.ne.s32.totalorder %s226, %s229
      %p238 = scmp.eq.s32.totalorder %s25, 7
      %p239 = por %p237, %p238
      %p240 = scmp.ne.s32.totalorder %s229, %s230
      %p241 = scmp.eq.s32.totalorder %s25, 0
      %p242 = por %p240, %p241
      %p243 = scmp.ne.s32.totalorder %s229, %s230
      %p244 = scmp.eq.s32.totalorder %s26, 7
      %p245 = por %p243, %p244
      %p247 = scmp.ne.s32.totalorder %s230, %s246
      %p248 = scmp.eq.s32.totalorder %s26, 0
      %p249 = por %p247, %p248
      %p250 = scmp.le.s32.totalorder 1, %s20
      %p251 = scmp.lt.s32.totalorder %s20, 9
      %p252 = pnand %p250, %p251
      %p253 = pneg %p252
      // Predicated region
      $region9: #{tpu_custom_call.1} parent=5 // pred_check
        _
      $region10: #{tpu_custom_call.1} parent=5 // pred_check_branch
        %255 = sbr.rel (%p252) target = $region12
      $region11: #{tpu_custom_call.1} parent=5 // pred_region
        %s256 = ssub.s32 %s20, 1
        // Predicated region
        $region13: #{tpu_custom_call.1} parent=11 // pred_check
          %p257 = pneg %p109
        $region14: #{tpu_custom_call.1} parent=11 // pred_check_branch
          %259 = sbr.rel (%p257) target = $region16
        $region15: #{tpu_custom_call.1} parent=11 // pred_region
          _
        $region16: #{tpu_custom_call.1} parent=11 // pred_fallthru
          _
        // Predicated region
        $region17: #{tpu_custom_call.1} parent=11 // pred_check
          %p260 = pneg %p130
        $region18: #{tpu_custom_call.1} parent=11 // pred_check_branch
          %262 = sbr.rel (%p260) target = $region20
        $region19: #{tpu_custom_call.1} parent=11 // pred_region
          _
        $region20: #{tpu_custom_call.1} parent=11 // pred_fallthru
          _
        // Predicated region
        $region21: #{tpu_custom_call.1} parent=11 // pred_check
          %p263 = pneg %p151
        $region22: #{tpu_custom_call.1} parent=11 // pred_check_branch
          %265 = sbr.rel (%p263) target = $region24
        $region23: #{tpu_custom_call.1} parent=11 // pred_region
          _
        $region24: #{tpu_custom_call.1} parent=11 // pred_fallthru
          _
        // Predicated region
        $region25: #{tpu_custom_call.1} parent=11 // pred_check
          %p266 = pneg %p172
        $region26: #{tpu_custom_call.1} parent=11 // pred_check_branch
          %268 = sbr.rel (%p266) target = $region28
        $region27: #{tpu_custom_call.1} parent=11 // pred_region
          _
        $region28: #{tpu_custom_call.1} parent=11 // pred_fallthru
          _
        // Predicated region
        $region29: #{tpu_custom_call.1} parent=11 // pred_check
          %p269 = pneg %p193
        $region30: #{tpu_custom_call.1} parent=11 // pred_check_branch
          %271 = sbr.rel (%p269) target = $region32
        $region31: #{tpu_custom_call.1} parent=11 // pred_region
          _
        $region32: #{tpu_custom_call.1} parent=11 // pred_fallthru
          _
        // Predicated region
        $region33: #{tpu_custom_call.1} parent=11 // pred_check
          %p272 = pneg %p214
        $region34: #{tpu_custom_call.1} parent=11 // pred_check_branch
          %274 = sbr.rel (%p272) target = $region36
        $region35: #{tpu_custom_call.1} parent=11 // pred_region
          _
        $region36: #{tpu_custom_call.1} parent=11 // pred_fallthru
          _
      $region12: #{tpu_custom_call.1} parent=5 // pred_fallthru
        _
      %p275 = scmp.lt.s32.totalorder %s20, 8
      // Predicated region
      $region37: #{tpu_custom_call.1} parent=5 // pred_check
        %p276 = pneg %p275
      $region38: #{tpu_custom_call.1} parent=5 // pred_check_branch
        %278 = sbr.rel (%p276) target = $region40
      $region39: #{tpu_custom_call.1} parent=5 // pred_region
        // Predicated region
        $region41: #{tpu_custom_call.1} parent=39 // pred_check
          %p279 = pneg %p54
        $region42: #{tpu_custom_call.1} parent=39 // pred_check_branch
          %281 = sbr.rel (%p279) target = $region44
        $region43: #{tpu_custom_call.1} parent=39 // pred_region
          %s282 = sand.u32 %s44, 1
          %s283 = scalar_lea.sflag [#allocation3], %s282
          %s284 = sand.u32 %s44, 1
          %s285 = smul.addr %s284, 64
          %s286 = scalar_lea.vmem [#allocation2], %s285
          %s287 = smul.u32 8, %s28
          %s289 = ssub.s32 1024, 1024
          %290 = vsyncadd %s283, %s289
          %s291 = smul.addr %s27, 32
          %s292 = sadd.s32 %s287, %s291
          %s293 = smul.addr %s292, 128
          %s294 = scalar_lea.hbm %s0, %s293
          %s295 = sshll.u32 %s286, 4
          %s296 = int_to_ptr.vmem [resolvable:$true] %s295
          %301 = dma.hbm_to_vmem [thread:$0]  %s294, 1024, %s296, %s283, 128, 128, 8
        $region44: #{tpu_custom_call.1} parent=39 // pred_fallthru
          _
        // Predicated region
        $region45: #{tpu_custom_call.1} parent=39 // pred_check
          %p302 = pneg %p82
        $region46: #{tpu_custom_call.1} parent=39 // pred_check_branch
          %304 = sbr.rel (%p302) target = $region48
        $region47: #{tpu_custom_call.1} parent=39 // pred_region
          %p305 = scmp.lt.s32.totalorder %s27, 1
          %s306 = scalar_select %p305, %s27, 1
          %p307 = scmp.lt.s32.totalorder %s28, 3
          %s308 = scalar_select %p307, %s28, 3
          %s309 = smul.addr %s306, 4
          %s310 = sadd.s32 %s308, %s309
          %s311 = smul.addr %s310, 2
          %s312 = scalar_lea.vmem %s1, %s311
        $region48: #{tpu_custom_call.1} parent=39 // pred_fallthru
          _
      $region40: #{tpu_custom_call.1} parent=5 // pred_fallthru
        _
      %p313 = scmp.le.s32.totalorder 1, %s20
      %p314 = scmp.lt.s32.totalorder %s20, 9
      %p315 = pnand %p313, %p314
      %p316 = pneg %p315
      // Predicated region
      $region49: #{tpu_custom_call.1} parent=5 // pred_check
        _
      $region50: #{tpu_custom_call.1} parent=5 // pred_check_branch
        %318 = sbr.rel (%p315) target = $region52
      $region51: #{tpu_custom_call.1} parent=5 // pred_region
        %s319 = ssub.s32 %s20, 1
        %s320 = sand.u32 %s47, 1
        %s321 = scalar_lea.sflag [#allocation3], %s320
        %s322 = sand.u32 %s47, 1
        %s323 = smul.addr %s322, 64
        %s324 = scalar_lea.vmem [#allocation2], %s323
        // Predicated region
        $region53: #{tpu_custom_call.1} parent=51 // pred_check
          %p325 = pneg %p60
        $region54: #{tpu_custom_call.1} parent=51 // pred_check_branch
          %327 = sbr.rel (%p325) target = $region56
        $region55: #{tpu_custom_call.1} parent=51 // pred_region
          %328 = dma.done %s321, 1024
        $region56: #{tpu_custom_call.1} parent=51 // pred_fallthru
          _
        %s329 = sand.u32 %s47, 1
        %s330 = scalar_lea.sflag [#allocation3], %s329
        %s331 = sand.u32 %s47, 1
        %s332 = smul.addr %s331, 64
        %s333 = scalar_lea.vmem [#allocation2], %s332
        %p334 = pneg %p60
        %p335 = pneg %p57
        %p336 = scmp.lt.s32.totalorder %s29, 1
        %s337 = scalar_select %p336, %s29, 1
        %p338 = scmp.lt.s32.totalorder %s30, 3
        %s339 = scalar_select %p338, %s30, 3
        %s340 = smul.addr %s337, 4
        %s341 = sadd.s32 %s339, %s340
        %s342 = smul.addr %s341, 2
        %s343 = scalar_lea.vmem %s1, %s342
        %p344 = pneg %p88
        %p345 = pneg %p85
        %p346 = pneg %p109
        %p347 = pneg %p106
        %p348 = pneg %p130
        %p349 = pneg %p127
        %p350 = pneg %p151
        %p351 = pneg %p148
        %p352 = pneg %p172
        %p353 = pneg %p169
        %p354 = pneg %p193
        %p355 = pneg %p190
        %p356 = pneg %p214
        %p357 = pneg %p211
        %p358 = pneg %p242
        %p359 = pneg %p239
        %s360 = sand.u32 %s229, 1
        %s361 = scalar_lea.sflag [#allocation4], %s360
        %s362 = sand.u32 %s229, 1
        %s363 = smul.addr %s362, 64
        %s364 = scalar_lea.vmem [#allocation5], %s363
        %s365 = smul.u32 8, %s30
        %p366 = scmp.lt.s32.totalorder %s29, 1
        %s367 = scalar_select %p366, %s29, 1
        %p368 = scmp.lt.s32.totalorder %s30, 3
        %s369 = scalar_select %p368, %s30, 3
        %s370 = smul.addr %s367, 4
        %s371 = sadd.s32 %s369, %s370
        %s372 = smul.addr %s371, 2
        %s373 = scalar_lea.vmem %s1, %s372
        %s374 = smul.u32 8, %s30
        %v376 = vld [vmem:[%s324] sm:$0xff]
        %v377 = vld [vmem:[%s324 + $0x8] sm:$0xff]
        %v378 = vld [vmem:[%s324 + $0x10] sm:$0xff]
        %v379 = vld [vmem:[%s324 + $0x18] sm:$0xff]
        %v380 = vld [vmem:[%s324 + $0x20] sm:$0xff]
        %v381 = vld [vmem:[%s324 + $0x28] sm:$0xff]
        %v382 = vld [vmem:[%s324 + $0x30] sm:$0xff]
        %v383 = vld [vmem:[%s324 + $0x38] sm:$0xff]
        %v384 = vld [vmem:[%s2] sm:$0xf]
        %v385 = vld [vmem:[%s2 + $0x4] sm:$0xf]
        %v386 = vld [vmem:[%s2 + $0x8] sm:$0xf]
        %v387 = vld [vmem:[%s2 + $0xc] sm:$0xf]
        %v388 = vld [vmem:[%s2 + $0x10] sm:$0xf]
        %v389 = vld [vmem:[%s2 + $0x14] sm:$0xf]
        %v390 = vld [vmem:[%s2 + $0x18] sm:$0xf]
        %v391 = vld [vmem:[%s2 + $0x1c] sm:$0xf]
        %v392 = vld [vmem:[%s2 + $0x20] sm:$0xf]
        %v393 = vld [vmem:[%s2 + $0x24] sm:$0xf]
        %v394 = vld [vmem:[%s2 + $0x28] sm:$0xf]
        %v395 = vld [vmem:[%s2 + $0x2c] sm:$0xf]
        %v396 = vld [vmem:[%s2 + $0x30] sm:$0xf]
        %v397 = vld [vmem:[%s2 + $0x34] sm:$0xf]
        %v398 = vld [vmem:[%s2 + $0x38] sm:$0xf]
        %v399 = vld [vmem:[%s2 + $0x3c] sm:$0xf]
        %v400 = vpack.c.bf16 %v377, %v376
        %v401 = vpack.c.bf16 %v379, %v378
        %v402 = vpack.c.bf16 %v381, %v380
        %v403 = vpack.c.bf16 %v383, %v382
        %v404 = vld [vmem:[%s3] sm:$0x1]
        %v406 = vlaneseq
        %v407 = vshrl.u32 %v406, 7
        %v408 = vsub.s32 0, %v407
        %v409 = vrot.slane %v404, %v408
        %v427 = vunpack.c.l.b16 %v384
        %v428 = vunpack.c.l.b16 %v385
        %v429 = vunpack.c.l.b16 %v386
        %v430 = vunpack.c.l.b16 %v387
        %v431 = vunpack.c.l.b16 %v388
        %v432 = vunpack.c.l.b16 %v389
        %v433 = vunpack.c.l.b16 %v390
        %v434 = vunpack.c.l.b16 %v391
        %v435 = vunpack.c.l.b16 %v392
        %v436 = vunpack.c.l.b16 %v393
        %v437 = vunpack.c.l.b16 %v394
        %v438 = vunpack.c.l.b16 %v395
        %v439 = vunpack.c.l.b16 %v396
        %v440 = vunpack.c.l.b16 %v397
        %v441 = vunpack.c.l.b16 %v398
        %v442 = vunpack.c.l.b16 %v399
        %v443 = vpack.c.b16 %v428, %v427
        %v444 = vpack.c.b16 %v430, %v429
        %v445 = vpack.c.b16 %v432, %v431
        %v446 = vpack.c.b16 %v434, %v433
        %v447 = vpack.c.b16 %v436, %v435
        %v448 = vpack.c.b16 %v438, %v437
        %v449 = vpack.c.b16 %v440, %v439
        %v450 = vpack.c.b16 %v442, %v441
        %459 = vmatprep.subr.bf16.mxu0 0
        %460 = vmatpush1.bf16.msra.mxu0 %v450
        %461 = vmatprep.subr.bf16.mxu0 0
        %462 = vmatpush1.bf16.msra.mxu0 %v449
        %463 = vmatprep.subr.bf16.mxu0 0
        %464 = vmatpush1.bf16.msra.mxu0 %v448
        %465 = vmatprep.subr.bf16.mxu0 0
        %466 = vmatpush1.bf16.msra.mxu0 %v447
        %467 = vmatprep.subr.bf16.mxu0 0
        %468 = vmatpush1.bf16.msra.mxu0 %v446
        %469 = vmatprep.subr.bf16.mxu0 0
        %470 = vmatpush1.bf16.msra.mxu0 %v445
        %471 = vmatprep.subr.bf16.mxu0 0
        %472 = vmatpush1.bf16.msra.mxu0 %v444
        %473 = vmatprep.subr.bf16.mxu0 0
        %474 = vmatpush1.bf16.msra.mxu0 %v443
        %475 = vmatprep.subr.bf16.mxu0 0
        %476 = vmatpush2.bf16.msra.mxu0 0
        %477 = vmatprep.subr.bf16.mxu0 0
        %478 = vmatpush2.bf16.msra.mxu0 0
        %479 = vmatprep.subr.bf16.mxu0 0
        %480 = vmatpush2.bf16.msra.mxu0 0
        %481 = vmatprep.subr.bf16.mxu0 0
        %482 = vmatpush2.bf16.msra.mxu0 0
        %483 = vmatprep.subr.bf16.mxu0 0
        %484 = vmatpush2.bf16.msra.mxu0 0
        %485 = vmatprep.subr.bf16.mxu0 0
        %486 = vmatpush2.bf16.msra.mxu0 0
        %487 = vmatprep.subr.bf16.mxu0 0
        %488 = vmatpush2.bf16.msra.mxu0 0
        %489 = vmatprep.subr.bf16.mxu0 0
        %490 = vmatpush2.bf16.msra.mxu0 0
        %491 = vmatprep.mubr.bf16.mxu0 0
        %492 = vmatmul.mubr.bf16.gmra.mxu0 %v400
        %v493 = vpop.f32.mrf.mxu0
        %v494 = vadd.f32 %v409, %v493
        %v495 = vpop.f32.mrf.mxu0
        %v496 = vpop.f32.mrf.mxu0
        %v497 = vadd.f32 %v409, %v496
        %v498 = vpop.f32.mrf.mxu0
        %499 = vmatprep.mubr.bf16.mxu0 0
        %500 = vmatmul.mubr.bf16.gmra.mxu0 %v401
        %v501 = vpop.f32.mrf.mxu0
        %v502 = vadd.f32 %v409, %v501
        %v503 = vpop.f32.mrf.mxu0
        %v504 = vpop.f32.mrf.mxu0
        %v505 = vadd.f32 %v409, %v504
        %v506 = vpop.f32.mrf.mxu0
        %507 = vmatprep.mubr.bf16.mxu0 0
        %508 = vmatmul.mubr.bf16.gmra.mxu0 %v402
        %v509 = vpop.f32.mrf.mxu0
        %v510 = vadd.f32 %v409, %v509
        %v511 = vpop.f32.mrf.mxu0
        %v512 = vpop.f32.mrf.mxu0
        %v513 = vadd.f32 %v409, %v512
        %v514 = vpop.f32.mrf.mxu0
        %515 = vmatprep.mubr.bf16.mxu0 0
        %516 = vmatmul.mubr.bf16.gmra.mxu0 %v403
        %v517 = vpop.f32.mrf.mxu0
        %v518 = vadd.f32 %v409, %v517
        %v519 = vpop.f32.mrf.mxu0
        %v520 = vpop.f32.mrf.mxu0
        %v521 = vadd.f32 %v409, %v520
        %v522 = vpop.f32.mrf.mxu0
        %523 = vdwg.mxu0
        %v524 = vmax.f32 %v494, 0.0
        %v525 = vmax.f32 %v497, 0.0
        %v526 = vmax.f32 %v502, 0.0
        %v527 = vmax.f32 %v505, 0.0
        %v528 = vmax.f32 %v510, 0.0
        %v529 = vmax.f32 %v513, 0.0
        %v530 = vmax.f32 %v518, 0.0
        %v531 = vmax.f32 %v521, 0.0
        %v532 = vld [vmem:[%s373] sm:$0x3]
        %v533 = vpack.c.bf16 %v532, %v532
        %534 = vmatprep.subr.bf16.mxu0 0
        %535 = vmatpush1.bf16.msra.mxu0 %v450
        %536 = vmatprep.subr.bf16.mxu0 0
        %537 = vmatpush1.bf16.msra.mxu0 %v449
        %538 = vmatprep.subr.bf16.mxu0 0
        %539 = vmatpush1.bf16.msra.mxu0 %v448
        %540 = vmatprep.subr.bf16.mxu0 0
        %541 = vmatpush1.bf16.msra.mxu0 %v447
        %542 = vmatprep.subr.bf16.mxu0 0
        %543 = vmatpush1.bf16.msra.mxu0 %v446
        %544 = vmatprep.subr.bf16.mxu0 0
        %545 = vmatpush1.bf16.msra.mxu0 %v445
        %546 = vmatprep.subr.bf16.mxu0 0
        %547 = vmatpush1.bf16.msra.mxu0 %v444
        %548 = vmatprep.subr.bf16.mxu0 0
        %549 = vmatpush1.bf16.msra.mxu0 %v443
        %550 = vmatprep.subr.bf16.mxu0 0
        %551 = vmatpush2.bf16.msra.mxu0 0
        %552 = vmatprep.subr.bf16.mxu0 0
        %553 = vmatpush2.bf16.msra.mxu0 0
        %554 = vmatprep.subr.bf16.mxu0 0
        %555 = vmatpush2.bf16.msra.mxu0 0
        %556 = vmatprep.subr.bf16.mxu0 0
        %557 = vmatpush2.bf16.msra.mxu0 0
        %558 = vmatprep.subr.bf16.mxu0 0
        %559 = vmatpush2.bf16.msra.mxu0 0
        %560 = vmatprep.subr.bf16.mxu0 0
        %561 = vmatpush2.bf16.msra.mxu0 0
        %562 = vmatprep.subr.bf16.mxu0 0
        %563 = vmatpush2.bf16.msra.mxu0 0
        %564 = vmatprep.subr.bf16.mxu0 0
        %565 = vmatpush2.bf16.msra.mxu0 0
        %566 = vmatprep.mubr.bf16.mxu0 0
        %567 = vmatmul.mubr.bf16.gmra.mxu0 %v533
        %v568 = vpop.f32.mrf.mxu0
        %v569 = vadd.f32 %v409, %v568
        %v570 = vpop.f32.mrf.mxu0
        %v571 = vpop.f32.mrf.mxu0
        %v572 = vpop.f32.mrf.mxu0
        %573 = vdwg.mxu0
        %v574 = vmax.f32 %v569, 0.0
        %p575 = scmp.eq.s32.totalorder %s30, 0
        %s576 = scalar_select %p575, 1, 0
        %v577 = vstv %s576
        %vm578 = vcmp.eq.s32.totalorder %v577, 1
        %v579 = vsel %vm578, 0.0, %v574
        %p580 = scmp.eq.s32.totalorder %s30, 3
        %s581 = scalar_select %p580, 1, 0
        %v582 = vstv %s581
        %vm583 = vcmp.eq.s32.totalorder %v582, 1
        %v584 = vsel %vm583, 0.0, %v574
        %v585 = vlaneseq
        %v586 = vshrl.u32 %v585, 7
        %v587 = vadd.s32 %v586, 8
        %v588 = vadd.s32 %v586, 16
        %v589 = vadd.s32 %v586, 24
        %v590 = vadd.s32 %v586, 32
        %v591 = vadd.s32 %v586, 40
        %v592 = vadd.s32 %v586, 48
        %v593 = vadd.s32 %v586, 56
        %vm594 = vcmp.eq.s32.totalorder %v586, 0
        %vm595 = vcmp.eq.s32.totalorder %v587, 0
        %vm596 = vcmp.eq.s32.totalorder %v588, 0
        %vm597 = vcmp.eq.s32.totalorder %v589, 0
        %vm598 = vcmp.eq.s32.totalorder %v590, 0
        %vm599 = vcmp.eq.s32.totalorder %v591, 0
        %vm600 = vcmp.eq.s32.totalorder %v592, 0
        %vm601 = vcmp.eq.s32.totalorder %v593, 0
        %v602 = vrot.slane %v524, 7
        %v603 = vrot.slane %v525, 7
        %v604 = vrot.slane %v526, 7
        %v605 = vrot.slane %v527, 7
        %v606 = vrot.slane %v528, 7
        %v607 = vrot.slane %v529, 7
        %v608 = vrot.slane %v530, 7
        %v609 = vrot.slane %v531, 7
        %vm610 = vcmp.lt.s32.totalorder %v586, 1
        %v611 = vsel %vm610, %v608, %v609
        %v612 = vsel %vm610, %v607, %v608
        %v613 = vsel %vm610, %v606, %v607
        %v614 = vsel %vm610, %v605, %v606
        %v615 = vsel %vm610, %v604, %v605
        %v616 = vsel %vm610, %v603, %v604
        %v617 = vsel %vm610, %v602, %v603
        %v618 = vsel %vm610, %v609, %v602
        %v619 = vlaneseq
        %v620 = vshrl.u32 %v619, 7
        %v621 = vsub.s32 0, %v620
        %v622 = vrot.slane %v579, %v621
        %v623 = vsel %vm594, %v622, %v618
        %v624 = vsel %vm595, %v622, %v617
        %v625 = vsel %vm596, %v622, %v616
        %v626 = vsel %vm597, %v622, %v615
        %v627 = vsel %vm598, %v622, %v614
        %v628 = vsel %vm599, %v622, %v613
        %v629 = vsel %vm600, %v622, %v612
        %v630 = vsel %vm601, %v622, %v611
        %vm631 = vcmp.eq.s32.totalorder %v586, 63
        %vm632 = vcmp.eq.s32.totalorder %v587, 63
        %vm633 = vcmp.eq.s32.totalorder %v588, 63
        %vm634 = vcmp.eq.s32.totalorder %v589, 63
        %vm635 = vcmp.eq.s32.totalorder %v590, 63
        %vm636 = vcmp.eq.s32.totalorder %v591, 63
        %vm637 = vcmp.eq.s32.totalorder %v592, 63
        %vm638 = vcmp.eq.s32.totalorder %v593, 63
        %v639 = vrot.slane %v524, 1
        %v640 = vrot.slane %v525, 1
        %v641 = vrot.slane %v526, 1
        %v642 = vrot.slane %v527, 1
        %v643 = vrot.slane %v528, 1
        %v644 = vrot.slane %v529, 1
        %v645 = vrot.slane %v530, 1
        %v646 = vrot.slane %v531, 1
        %vm647 = vcmp.lt.s32.totalorder %v586, 7
        %v648 = vsel %vm647, %v645, %v646
        %v649 = vsel %vm647, %v644, %v645
        %v650 = vsel %vm647, %v643, %v644
        %v651 = vsel %vm647, %v642, %v643
        %v652 = vsel %vm647, %v641, %v642
        %v653 = vsel %vm647, %v640, %v641
        %v654 = vsel %vm647, %v639, %v640
        %v655 = vsel %vm647, %v646, %v639
        %v656 = vlaneseq
        %v657 = vshrl.u32 %v656, 7
        %v658 = vsub.s32 1, %v657
        %v659 = vrot.slane %v584, %v658
        %v660 = vsel %vm631, %v659, %v654
        %v661 = vsel %vm632, %v659, %v653
        %v662 = vsel %vm633, %v659, %v652
        %v663 = vsel %vm634, %v659, %v651
        %v664 = vsel %vm635, %v659, %v650
        %v665 = vsel %vm636, %v659, %v649
        %v666 = vsel %vm637, %v659, %v648
        %v667 = vsel %vm638, %v659, %v655
        %v668 = vpack.c.bf16 %v624, %v623
        %v669 = vpack.c.bf16 %v626, %v625
        %v670 = vpack.c.bf16 %v628, %v627
        %v671 = vpack.c.bf16 %v630, %v629
        %v672 = vld [vmem:[%s4] sm:$0xf]
        %v673 = vld [vmem:[%s4 + $0x4] sm:$0xf]
        %v674 = vld [vmem:[%s4 + $0x8] sm:$0xf]
        %v675 = vld [vmem:[%s4 + $0xc] sm:$0xf]
        %v676 = vpack.c.bf16 %v525, %v524
        %v677 = vpack.c.bf16 %v527, %v526
        %v678 = vpack.c.bf16 %v529, %v528
        %v679 = vpack.c.bf16 %v531, %v530
        %s680 = scalar_lea.vmem %s4, 16
        %v681 = vld [vmem:[%s680] sm:$0xf]
        %v682 = vld [vmem:[%s680 + $0x4] sm:$0xf]
        %v683 = vld [vmem:[%s680 + $0x8] sm:$0xf]
        %v684 = vld [vmem:[%s680 + $0xc] sm:$0xf]
        %v689 = vunpack.c.l.b16 %v681
        %v690 = vunpack.c.l.b16 %v682
        %v691 = vunpack.c.l.b16 %v683
        %v692 = vunpack.c.l.b16 %v684
        %v693 = vpack.c.b16 %v690, %v689
        %v694 = vpack.c.b16 %v692, %v691
        %vm697 = vcmask 261120
        %v699 = vsel %vm697, %v676, 0
        %v702 = vsel %vm697, %v677, 0
        %v705 = vsel %vm697, %v678, 0
        %v708 = vsel %vm697, %v679, 0
        %710 = vmatprep.subr.bf16.mxu0 0
        %711 = vmatpush1.bf16.msra.mxu0 0
        %712 = vmatprep.subr.bf16.mxu0 0
        %713 = vmatpush1.bf16.msra.mxu0 0
        %714 = vmatprep.subr.bf16.mxu0 0
        %715 = vmatpush1.bf16.msra.mxu0 0
        %716 = vmatprep.subr.bf16.mxu0 0
        %717 = vmatpush1.bf16.msra.mxu0 0
        %718 = vmatprep.subr.bf16.mxu0 0
        %719 = vmatpush1.bf16.msra.mxu0 0
        %720 = vmatprep.subr.bf16.mxu0 0
        %721 = vmatpush1.bf16.msra.mxu0 0
        %722 = vmatprep.subr.bf16.mxu0 0
        %723 = vmatpush1.bf16.msra.mxu0 %v694
        %724 = vmatprep.subr.bf16.mxu0 0
        %725 = vmatpush1.bf16.msra.mxu0 %v693
        %726 = vmatprep.subr.bf16.mxu0 0
        %727 = vmatpush2.bf16.msra.mxu0 0
        %728 = vmatprep.subr.bf16.mxu0 0
        %729 = vmatpush2.bf16.msra.mxu0 0
        %730 = vmatprep.subr.bf16.mxu0 0
        %731 = vmatpush2.bf16.msra.mxu0 0
        %732 = vmatprep.subr.bf16.mxu0 0
        %733 = vmatpush2.bf16.msra.mxu0 0
        %734 = vmatprep.subr.bf16.mxu0 0
        %735 = vmatpush2.bf16.msra.mxu0 0
        %736 = vmatprep.subr.bf16.mxu0 0
        %737 = vmatpush2.bf16.msra.mxu0 0
        %738 = vmatprep.subr.bf16.mxu0 0
        %739 = vmatpush2.bf16.msra.mxu0 0
        %740 = vmatprep.subr.bf16.mxu0 0
        %741 = vmatpush2.bf16.msra.mxu0 0
        %742 = vmatprep.mubr.bf16.mxu0 0
        %743 = vmatmul.mubr.bf16.gmra.mxu0 %v699
        %v744 = vpop.f32.mrf.mxu0
        %v745 = vadd.f32 0.0, %v744
        %v746 = vpop.f32.mrf.mxu0
        %v747 = vpop.f32.mrf.mxu0
        %v748 = vadd.f32 0.0, %v747
        %v749 = vpop.f32.mrf.mxu0
        %750 = vmatprep.mubr.bf16.mxu0 0
        %751 = vmatmul.mubr.bf16.gmra.mxu0 %v702
        %v752 = vpop.f32.mrf.mxu0
        %v753 = vadd.f32 0.0, %v752
        %v754 = vpop.f32.mrf.mxu0
        %v755 = vpop.f32.mrf.mxu0
        %v756 = vadd.f32 0.0, %v755
        %v757 = vpop.f32.mrf.mxu0
        %758 = vmatprep.mubr.bf16.mxu0 0
        %759 = vmatmul.mubr.bf16.gmra.mxu0 %v705
        %v760 = vpop.f32.mrf.mxu0
        %v761 = vadd.f32 0.0, %v760
        %v762 = vpop.f32.mrf.mxu0
        %v763 = vpop.f32.mrf.mxu0
        %v764 = vadd.f32 0.0, %v763
        %v765 = vpop.f32.mrf.mxu0
        %766 = vmatprep.mubr.bf16.mxu0 0
        %767 = vmatmul.mubr.bf16.gmra.mxu0 %v708
        %v768 = vpop.f32.mrf.mxu0
        %v769 = vadd.f32 0.0, %v768
        %v770 = vpop.f32.mrf.mxu0
        %v771 = vpop.f32.mrf.mxu0
        %v772 = vadd.f32 0.0, %v771
        %v773 = vpop.f32.mrf.mxu0
        %774 = vdwg.mxu0
        %v779 = vunpack.c.l.b16 %v672
        %v780 = vunpack.c.l.b16 %v673
        %v781 = vunpack.c.l.b16 %v674
        %v782 = vunpack.c.l.b16 %v675
        %v783 = vpack.c.b16 %v780, %v779
        %v784 = vpack.c.b16 %v782, %v781
        %v788 = vsel %vm697, %v668, 0
        %v791 = vsel %vm697, %v669, 0
        %v794 = vsel %vm697, %v670, 0
        %v797 = vsel %vm697, %v671, 0
        %799 = vmatprep.subr.bf16.mxu0 0
        %800 = vmatpush1.bf16.msra.mxu0 0
        %801 = vmatprep.subr.bf16.mxu0 0
        %802 = vmatpush1.bf16.msra.mxu0 0
        %803 = vmatprep.subr.bf16.mxu0 0
        %804 = vmatpush1.bf16.msra.mxu0 0
        %805 = vmatprep.subr.bf16.mxu0 0
        %806 = vmatpush1.bf16.msra.mxu0 0
        %807 = vmatprep.subr.bf16.mxu0 0
        %808 = vmatpush1.bf16.msra.mxu0 0
        %809 = vmatprep.subr.bf16.mxu0 0
        %810 = vmatpush1.bf16.msra.mxu0 0
        %811 = vmatprep.subr.bf16.mxu0 0
        %812 = vmatpush1.bf16.msra.mxu0 %v784
        %813 = vmatprep.subr.bf16.mxu0 0
        %814 = vmatpush1.bf16.msra.mxu0 %v783
        %815 = vmatprep.subr.bf16.mxu0 0
        %816 = vmatpush2.bf16.msra.mxu0 0
        %817 = vmatprep.subr.bf16.mxu0 0
        %818 = vmatpush2.bf16.msra.mxu0 0
        %819 = vmatprep.subr.bf16.mxu0 0
        %820 = vmatpush2.bf16.msra.mxu0 0
        %821 = vmatprep.subr.bf16.mxu0 0
        %822 = vmatpush2.bf16.msra.mxu0 0
        %823 = vmatprep.subr.bf16.mxu0 0
        %824 = vmatpush2.bf16.msra.mxu0 0
        %825 = vmatprep.subr.bf16.mxu0 0
        %826 = vmatpush2.bf16.msra.mxu0 0
        %827 = vmatprep.subr.bf16.mxu0 0
        %828 = vmatpush2.bf16.msra.mxu0 0
        %829 = vmatprep.subr.bf16.mxu0 0
        %830 = vmatpush2.bf16.msra.mxu0 0
        %831 = vmatprep.mubr.bf16.mxu0 0
        %832 = vmatmul.mubr.bf16.gmra.mxu0 %v788
        %v833 = vpop.f32.mrf.mxu0
        %v834 = vadd.f32 %v745, %v833
        %v835 = vpop.f32.mrf.mxu0
        %v836 = vpop.f32.mrf.mxu0
        %v837 = vadd.f32 %v748, %v836
        %v838 = vpop.f32.mrf.mxu0
        %839 = vmatprep.mubr.bf16.mxu0 0
        %840 = vmatmul.mubr.bf16.gmra.mxu0 %v791
        %v841 = vpop.f32.mrf.mxu0
        %v842 = vadd.f32 %v753, %v841
        %v843 = vpop.f32.mrf.mxu0
        %v844 = vpop.f32.mrf.mxu0
        %v845 = vadd.f32 %v756, %v844
        %v846 = vpop.f32.mrf.mxu0
        %847 = vmatprep.mubr.bf16.mxu0 0
        %848 = vmatmul.mubr.bf16.gmra.mxu0 %v794
        %v849 = vpop.f32.mrf.mxu0
        %v850 = vadd.f32 %v761, %v849
        %v851 = vpop.f32.mrf.mxu0
        %v852 = vpop.f32.mrf.mxu0
        %v853 = vadd.f32 %v764, %v852
        %v854 = vpop.f32.mrf.mxu0
        %855 = vmatprep.mubr.bf16.mxu0 0
        %856 = vmatmul.mubr.bf16.gmra.mxu0 %v797
        %v857 = vpop.f32.mrf.mxu0
        %v858 = vadd.f32 %v769, %v857
        %v859 = vpop.f32.mrf.mxu0
        %v860 = vpop.f32.mrf.mxu0
        %v861 = vadd.f32 %v772, %v860
        %v862 = vpop.f32.mrf.mxu0
        %863 = vdwg.mxu0
        %v864 = vpack.c.bf16 %v661, %v660
        %v865 = vpack.c.bf16 %v663, %v662
        %v866 = vpack.c.bf16 %v665, %v664
        %v867 = vpack.c.bf16 %v667, %v666
        %s868 = scalar_lea.vmem %s4, 32
        %v869 = vld [vmem:[%s868] sm:$0xf]
        %v870 = vld [vmem:[%s868 + $0x4] sm:$0xf]
        %v871 = vld [vmem:[%s868 + $0x8] sm:$0xf]
        %v872 = vld [vmem:[%s868 + $0xc] sm:$0xf]
        %v877 = vunpack.c.l.b16 %v869
        %v878 = vunpack.c.l.b16 %v870
        %v879 = vunpack.c.l.b16 %v871
        %v880 = vunpack.c.l.b16 %v872
        %v881 = vpack.c.b16 %v878, %v877
        %v882 = vpack.c.b16 %v880, %v879
        %v886 = vsel %vm697, %v864, 0
        %v889 = vsel %vm697, %v865, 0
        %v892 = vsel %vm697, %v866, 0
        %v895 = vsel %vm697, %v867, 0
        %897 = vmatprep.subr.bf16.mxu0 0
        %898 = vmatpush1.bf16.msra.mxu0 0
        %899 = vmatprep.subr.bf16.mxu0 0
        %900 = vmatpush1.bf16.msra.mxu0 0
        %901 = vmatprep.subr.bf16.mxu0 0
        %902 = vmatpush1.bf16.msra.mxu0 0
        %903 = vmatprep.subr.bf16.mxu0 0
        %904 = vmatpush1.bf16.msra.mxu0 0
        %905 = vmatprep.subr.bf16.mxu0 0
        %906 = vmatpush1.bf16.msra.mxu0 0
        %907 = vmatprep.subr.bf16.mxu0 0
        %908 = vmatpush1.bf16.msra.mxu0 0
        %909 = vmatprep.subr.bf16.mxu0 0
        %910 = vmatpush1.bf16.msra.mxu0 %v882
        %911 = vmatprep.subr.bf16.mxu0 0
        %912 = vmatpush1.bf16.msra.mxu0 %v881
        %913 = vmatprep.subr.bf16.mxu0 0
        %914 = vmatpush2.bf16.msra.mxu0 0
        %915 = vmatprep.subr.bf16.mxu0 0
        %916 = vmatpush2.bf16.msra.mxu0 0
        %917 = vmatprep.subr.bf16.mxu0 0
        %918 = vmatpush2.bf16.msra.mxu0 0
        %919 = vmatprep.subr.bf16.mxu0 0
        %920 = vmatpush2.bf16.msra.mxu0 0
        %921 = vmatprep.subr.bf16.mxu0 0
        %922 = vmatpush2.bf16.msra.mxu0 0
        %923 = vmatprep.subr.bf16.mxu0 0
        %924 = vmatpush2.bf16.msra.mxu0 0
        %925 = vmatprep.subr.bf16.mxu0 0
        %926 = vmatpush2.bf16.msra.mxu0 0
        %927 = vmatprep.subr.bf16.mxu0 0
        %928 = vmatpush2.bf16.msra.mxu0 0
        %929 = vmatprep.mubr.bf16.mxu0 0
        %930 = vmatmul.mubr.bf16.gmra.mxu0 %v886
        %v931 = vpop.f32.mrf.mxu0
        %v932 = vadd.f32 0.0, %v931
        %v933 = vpop.f32.mrf.mxu0
        %v934 = vpop.f32.mrf.mxu0
        %v935 = vadd.f32 0.0, %v934
        %v936 = vpop.f32.mrf.mxu0
        %937 = vmatprep.mubr.bf16.mxu0 0
        %938 = vmatmul.mubr.bf16.gmra.mxu0 %v889
        %v939 = vpop.f32.mrf.mxu0
        %v940 = vadd.f32 0.0, %v939
        %v941 = vpop.f32.mrf.mxu0
        %v942 = vpop.f32.mrf.mxu0
        %v943 = vadd.f32 0.0, %v942
        %v944 = vpop.f32.mrf.mxu0
        %945 = vmatprep.mubr.bf16.mxu0 0
        %946 = vmatmul.mubr.bf16.gmra.mxu0 %v892
        %v947 = vpop.f32.mrf.mxu0
        %v948 = vadd.f32 0.0, %v947
        %v949 = vpop.f32.mrf.mxu0
        %v950 = vpop.f32.mrf.mxu0
        %v951 = vadd.f32 0.0, %v950
        %v952 = vpop.f32.mrf.mxu0
        %953 = vmatprep.mubr.bf16.mxu0 0
        %954 = vmatmul.mubr.bf16.gmra.mxu0 %v895
        %v955 = vpop.f32.mrf.mxu0
        %v956 = vadd.f32 0.0, %v955
        %v957 = vpop.f32.mrf.mxu0
        %v958 = vpop.f32.mrf.mxu0
        %v959 = vadd.f32 0.0, %v958
        %v960 = vpop.f32.mrf.mxu0
        %961 = vdwg.mxu0
        %v962 = vadd.f32 %v834, %v932
        %v963 = vadd.f32 %v837, %v935
        %v964 = vadd.f32 %v842, %v940
        %v965 = vadd.f32 %v845, %v943
        %v966 = vadd.f32 %v850, %v948
        %v967 = vadd.f32 %v853, %v951
        %v968 = vadd.f32 %v858, %v956
        %v969 = vadd.f32 %v861, %v959
        %v970 = vld [vmem:[%s5] sm:$0x1]
        %v972 = vlaneseq
        %v973 = vshrl.u32 %v972, 7
        %v974 = vsub.s32 0, %v973
        %v975 = vrot.slane %v970, %v974
        %v977 = vadd.f32 %v962, %v975
        %v978 = vadd.f32 %v963, %v975
        %v979 = vadd.f32 %v964, %v975
        %v980 = vadd.f32 %v965, %v975
        %v981 = vadd.f32 %v966, %v975
        %v982 = vadd.f32 %v967, %v975
        %v983 = vadd.f32 %v968, %v975
        %v984 = vadd.f32 %v969, %v975
        %v985 = vmax.f32 %v977, 0.0
        %v986 = vmax.f32 %v978, 0.0
        %v987 = vmax.f32 %v979, 0.0
        %v988 = vmax.f32 %v980, 0.0
        %v989 = vmax.f32 %v981, 0.0
        %v990 = vmax.f32 %v982, 0.0
        %v991 = vmax.f32 %v983, 0.0
        %v992 = vmax.f32 %v984, 0.0
        %v993 = vpack.c.bf16 %v986, %v985
        %v994 = vpack.c.bf16 %v988, %v987
        %v995 = vpack.c.bf16 %v990, %v989
        %v996 = vpack.c.bf16 %v992, %v991
        %v997 = vld [vmem:[%s6] sm:$0xf]
        %v998 = vld [vmem:[%s6 + $0x4] sm:$0xf]
        %v999 = vld [vmem:[%s6 + $0x8] sm:$0xf]
        %v1000 = vld [vmem:[%s6 + $0xc] sm:$0xf]
        %v1001 = vld [vmem:[%s7] sm:$0x1]
        %v1003 = vlaneseq
        %v1004 = vshrl.u32 %v1003, 7
        %v1005 = vsub.s32 0, %v1004
        %v1006 = vrot.slane %v1001, %v1005
        %v1012 = vunpack.c.l.b16 %v997
        %v1013 = vunpack.c.l.b16 %v998
        %v1014 = vunpack.c.l.b16 %v999
        %v1015 = vunpack.c.l.b16 %v1000
        %v1016 = vpack.c.b16 %v1013, %v1012
        %v1017 = vpack.c.b16 %v1015, %v1014
        %v1021 = vsel %vm697, %v993, 0
        %v1024 = vsel %vm697, %v994, 0
        %v1027 = vsel %vm697, %v995, 0
        %v1030 = vsel %vm697, %v996, 0
        %1032 = vmatprep.subr.bf16.mxu0 0
        %1033 = vmatpush1.bf16.msra.mxu0 0
        %1034 = vmatprep.subr.bf16.mxu0 0
        %1035 = vmatpush1.bf16.msra.mxu0 0
        %1036 = vmatprep.subr.bf16.mxu0 0
        %1037 = vmatpush1.bf16.msra.mxu0 0
        %1038 = vmatprep.subr.bf16.mxu0 0
        %1039 = vmatpush1.bf16.msra.mxu0 0
        %1040 = vmatprep.subr.bf16.mxu0 0
        %1041 = vmatpush1.bf16.msra.mxu0 0
        %1042 = vmatprep.subr.bf16.mxu0 0
        %1043 = vmatpush1.bf16.msra.mxu0 0
        %1044 = vmatprep.subr.bf16.mxu0 0
        %1045 = vmatpush1.bf16.msra.mxu0 %v1017
        %1046 = vmatprep.subr.bf16.mxu0 0
        %1047 = vmatpush1.bf16.msra.mxu0 %v1016
        %1048 = vmatprep.subr.bf16.mxu0 0
        %1049 = vmatpush2.bf16.msra.mxu0 0
        %1050 = vmatprep.subr.bf16.mxu0 0
        %1051 = vmatpush2.bf16.msra.mxu0 0
        %1052 = vmatprep.subr.bf16.mxu0 0
        %1053 = vmatpush2.bf16.msra.mxu0 0
        %1054 = vmatprep.subr.bf16.mxu0 0
        %1055 = vmatpush2.bf16.msra.mxu0 0
        %1056 = vmatprep.subr.bf16.mxu0 0
        %1057 = vmatpush2.bf16.msra.mxu0 0
        %1058 = vmatprep.subr.bf16.mxu0 0
        %1059 = vmatpush2.bf16.msra.mxu0 0
        %1060 = vmatprep.subr.bf16.mxu0 0
        %1061 = vmatpush2.bf16.msra.mxu0 0
        %1062 = vmatprep.subr.bf16.mxu0 0
        %1063 = vmatpush2.bf16.msra.mxu0 0
        %1064 = vmatprep.mubr.bf16.mxu0 0
        %1065 = vmatmul.mubr.bf16.gmra.mxu0 %v1021
        %v1066 = vpop.f32.mrf.mxu0
        %v1067 = vadd.f32 %v1006, %v1066
        %v1068 = vpop.f32.mrf.mxu0
        %v1069 = vpop.f32.mrf.mxu0
        %v1070 = vadd.f32 %v1006, %v1069
        %v1071 = vpop.f32.mrf.mxu0
        %1072 = vmatprep.mubr.bf16.mxu0 0
        %1073 = vmatmul.mubr.bf16.gmra.mxu0 %v1024
        %v1074 = vpop.f32.mrf.mxu0
        %v1075 = vadd.f32 %v1006, %v1074
        %v1076 = vpop.f32.mrf.mxu0
        %v1077 = vpop.f32.mrf.mxu0
        %v1078 = vadd.f32 %v1006, %v1077
        %v1079 = vpop.f32.mrf.mxu0
        %1080 = vmatprep.mubr.bf16.mxu0 0
        %1081 = vmatmul.mubr.bf16.gmra.mxu0 %v1027
        %v1082 = vpop.f32.mrf.mxu0
        %v1083 = vadd.f32 %v1006, %v1082
        %v1084 = vpop.f32.mrf.mxu0
        %v1085 = vpop.f32.mrf.mxu0
        %v1086 = vadd.f32 %v1006, %v1085
        %v1087 = vpop.f32.mrf.mxu0
        %1088 = vmatprep.mubr.bf16.mxu0 0
        %1089 = vmatmul.mubr.bf16.gmra.mxu0 %v1030
        %v1090 = vpop.f32.mrf.mxu0
        %v1091 = vadd.f32 %v1006, %v1090
        %v1092 = vpop.f32.mrf.mxu0
        %v1093 = vpop.f32.mrf.mxu0
        %v1094 = vadd.f32 %v1006, %v1093
        %v1095 = vpop.f32.mrf.mxu0
        %1096 = vdwg.mxu0
        %v1097 = vadd.f32 %v1067, %v376
        %v1098 = vadd.f32 %v1070, %v377
        %v1099 = vadd.f32 %v1075, %v378
        %v1100 = vadd.f32 %v1078, %v379
        %v1101 = vadd.f32 %v1083, %v380
        %v1102 = vadd.f32 %v1086, %v381
        %v1103 = vadd.f32 %v1091, %v382
        %v1104 = vadd.f32 %v1094, %v383
        %v1105 = vmax.f32 %v1097, 0.0
        %v1106 = vmax.f32 %v1098, 0.0
        %v1107 = vmax.f32 %v1099, 0.0
        %v1108 = vmax.f32 %v1100, 0.0
        %v1109 = vmax.f32 %v1101, 0.0
        %v1110 = vmax.f32 %v1102, 0.0
        %v1111 = vmax.f32 %v1103, 0.0
        %v1112 = vmax.f32 %v1104, 0.0
        %1113 = vst [vmem:[%s364] sm:$0xff] %v1105
        %1114 = vst [vmem:[%s364 + $0x8] sm:$0xff] %v1106
        %1115 = vst [vmem:[%s364 + $0x10] sm:$0xff] %v1107
        %1116 = vst [vmem:[%s364 + $0x18] sm:$0xff] %v1108
        %1117 = vst [vmem:[%s364 + $0x20] sm:$0xff] %v1109
        %1118 = vst [vmem:[%s364 + $0x28] sm:$0xff] %v1110
        %1119 = vst [vmem:[%s364 + $0x30] sm:$0xff] %v1111
        %1120 = vst [vmem:[%s364 + $0x38] sm:$0xff] %v1112
        %s1121 = sand.u32 %s229, 1
        %s1122 = scalar_lea.sflag [#allocation4], %s1121
        %s1123 = sand.u32 %s229, 1
        %s1124 = smul.addr %s1123, 64
        %s1125 = scalar_lea.vmem [#allocation5], %s1124
        // Predicated region
        $region57: #{tpu_custom_call.1} parent=51 // pred_check
          %p1126 = pneg %p239
        $region58: #{tpu_custom_call.1} parent=51 // pred_check_branch
          %1128 = sbr.rel (%p1126) target = $region60
        $region59: #{tpu_custom_call.1} parent=51 // pred_region
          %s1129 = smul.u32 8, %s30
          %s1131 = ssub.s32 1024, 1024
          %1132 = vsyncadd %s1122, %s1131
          %s1133 = smul.addr %s29, 32
          %s1134 = sadd.s32 %s1129, %s1133
          %s1135 = smul.addr %s1134, 128
          %s1136 = scalar_lea.hbm %s8, %s1135
          %s1137 = sshll.u32 %s1125, 4
          %s1138 = int_to_ptr.vmem [resolvable:$true] %s1137
          %1143 = dma.vmem_to_hbm [thread:$0]  %s1138, 1024, %s1136, %s1122, 128, 128, 8
        $region60: #{tpu_custom_call.1} parent=51 // pred_fallthru
          _
      $region52: #{tpu_custom_call.1} parent=5 // pred_fallthru
        _
      %p1144 = scmp.le.s32.totalorder 2, %s20
      // Predicated region
      $region61: #{tpu_custom_call.1} parent=5 // pred_check
        %p1145 = pneg %p1144
      $region62: #{tpu_custom_call.1} parent=5 // pred_check_branch
        %1147 = sbr.rel (%p1145) target = $region64
      $region63: #{tpu_custom_call.1} parent=5 // pred_region
        %s1148 = ssub.s32 %s20, 2
        // Predicated region
        $region65: #{tpu_custom_call.1} parent=63 // pred_check
          %p1149 = pneg %p245
        $region66: #{tpu_custom_call.1} parent=63 // pred_check_branch
          %1151 = sbr.rel (%p1149) target = $region68
        $region67: #{tpu_custom_call.1} parent=63 // pred_region
          %s1152 = sand.u32 %s230, 1
          %s1153 = scalar_lea.sflag [#allocation4], %s1152
          %s1154 = sand.u32 %s230, 1
          %s1155 = smul.addr %s1154, 64
          %s1156 = scalar_lea.vmem [#allocation5], %s1155
          %1157 = dma.done %s1153, 1024
        $region68: #{tpu_custom_call.1} parent=63 // pred_fallthru
          _
      $region64: #{tpu_custom_call.1} parent=5 // pred_fallthru
        _
    $region6: #{tpu_custom_call.1} parent=1 // loop_footer
      %s24 = sadd.s32 1, %s20
    $region7: #{tpu_custom_call.1} parent=1 // loop_footer_branch
      %19 = sbr.rel target = $region3
    $region8: #{tpu_custom_call.1} parent=1 // loop_exit
      _
    %1158 = vsyncpa [#allocation3], 1
    %s1159 = scalar_lea.sflag [#allocation3], 1
    %1160 = vsyncpa %s1159, 1
    %1161 = vsyncpa [#allocation4], 1
    %s1162 = scalar_lea.sflag [#allocation4], 1
    %1163 = vsyncpa %s1162, 1

</llo_original>
